<compile_context>
chip_gen: v7x
topology: tpu7x:2x2x1
jax: 0.10.0
libtpu: 0.0.40
codegen_flags: <defaults>
</compile_context>

<pallas_src>
import jax
import jax.numpy as jnp
from jax import lax
from jax.experimental import pallas as pl
from jax.experimental.pallas import tpu as pltpu

LANE = 128


def _round_up(n, m):
    return -(-n // m) * m


def adversarial_adapter_kernel(x_ref, w1_ref, b1_ref, w2_ref, b2_ref,
                               w3_ref, b3_ref, o_ref):
    # x_ref : (TB, F)    native dtype (f32/bf16) -- streamed batch tile
    # w1_ref: (F,  Hp)   bf16  -- resident in VMEM
    # b1_ref: (1,  Hp)   f32   -- resident
    # w2_ref: (Hp, H2p)  bf16  -- resident
    # b2_ref: (1,  H2p)  f32   -- resident
    # w3_ref: (1,  H2p)  bf16  -- resident (row layout)
    # b3_ref: (1, 1)     f32   -- SMEM scalar
    # o_ref : (1, TB)    f32   -- lane-dense output slab
    x = x_ref[...]
    if x.dtype != jnp.bfloat16:
        # In-kernel VPU cast: the dominant x stream costs exactly one HBM read
        # of the native dtype (no wrapper-side cast / extra HBM pass).
        x = x.astype(jnp.bfloat16)

    # Layer 1: MXU matmul (bf16 in, f32 accumulate) + bias + ReLU in f32.
    h1 = jnp.dot(x, w1_ref[...], preferred_element_type=jnp.float32)
    h1 = jnp.maximum(h1 + b1_ref[...], 0.0)

    # Layer 2: same bf16-in / f32-accumulate contract.
    h2 = jnp.dot(h1.astype(jnp.bfloat16), w2_ref[...],
                 preferred_element_type=jnp.float32)
    h2 = jnp.maximum(h2 + b2_ref[...], 0.0)

    # Layer 3 (H2p -> 1): produced directly in (1, TB) lane-dense layout via a
    # transposed-RHS contraction (same pattern as q @ k.T) so the sigmoid and
    # the store operate on dense vregs, with no (TB,1)->(1,TB) relayout.
    logit = lax.dot_general(
        w3_ref[...], h2.astype(jnp.bfloat16),
        dimension_numbers=(((1,), (1,)), ((), ())),
        preferred_element_type=jnp.float32) + b3_ref[0, 0]
    o_ref[...] = jax.nn.sigmoid(logit).astype(o_ref.dtype)


def _vmem_budget_bytes():
    """~75% of this chip's per-core VMEM (headroom for compiler scratch)."""
    cap = 64 << 20                               # conservative default (v7x)
    try:
        info = pltpu.get_tpu_info()
        cap = int(getattr(info, "vmem_capacity_bytes", cap)) or cap
    except Exception:
        pass
    cap = min(cap, 128 << 20)
    return (cap * 3) // 4


def _choose_tb(F, Hp, H2p, x_itemsize, vmem_budget):
    """F- and chip-aware batch tile: big enough to amortize the ~0.35us/step
    fixed cost, small enough to fit the per-step VMEM budget."""
    # Per-row footprint: x double-buffer (native dtype) + in-kernel bf16 copy
    # of x + h1 (f32 + bf16) + h2 (f32 + bf16) + slack.
    per_row = 2 * F * x_itemsize + F * 2 + Hp * 6 + H2p * 6 + 64
    resident = F * Hp * 2 + Hp * H2p * 2 + (Hp + H2p) * 4 + H2p * 2 + 4096
    tb_vmem = max(LANE, (vmem_budget - resident) // per_row)
    tb_target = max(LANE, (4 << 20) // (F * x_itemsize))   # ~4 MiB of x / step
    tb = min(tb_target, tb_vmem, 8192)
    return max(LANE, (tb // LANE) * LANE)


def adversarial_adapter_forward(x, params, *, tb_override=None):
    """Eval-mode forward.  x: (B, in_feature); params in (in, out) layout."""
    B, F = x.shape
    H = params["w1"].shape[1]
    H2 = params["w2"].shape[1]
    Hp, H2p = _round_up(H, LANE), _round_up(H2, LANE)

    # Zero-pad hidden dims to full lane width (weights are tiny & resident).
    # Exact: padded biases are 0 so padded units are ReLU(0)=0, padded w3 = 0.
    w1 = jnp.zeros((F, Hp), jnp.bfloat16).at[:, :H].set(
        params["w1"].astype(jnp.bfloat16))
    b1 = jnp.zeros((1, Hp), jnp.float32).at[:, :H].set(
        params["b1"].reshape(1, H).astype(jnp.float32))
    w2 = jnp.zeros((Hp, H2p), jnp.bfloat16).at[:H, :H2].set(
        params["w2"].astype(jnp.bfloat16))
    b2 = jnp.zeros((1, H2p), jnp.float32).at[:, :H2].set(
        params["b2"].reshape(1, H2).astype(jnp.float32))
    w3 = jnp.zeros((1, H2p), jnp.bfloat16).at[:, :H2].set(
        params["w3"].reshape(1, H2).astype(jnp.bfloat16))
    b3 = params["b3"].reshape(1, 1).astype(jnp.float32)

    # ---- Batch tiling (chip- and F-aware; x is streamed, never padded) ----
    vmem_budget = _vmem_budget_bytes()
    xitem = jnp.dtype(x.dtype).itemsize
    tb = _choose_tb(F, Hp, H2p, xitem, vmem_budget)
    if tb_override is not None:
        tb = max(LANE, _round_up(int(tb_override), LANE))
    if B > tb:
        TB = tb                                        # multiple of 128
    elif B >= 2 * LANE and B * F * xitem >= (1 << 19):
        # Fits in one tile but big enough to split into >=2 steps so the
        # "parallel" batch axis can shard across v7x's two TensorCores.
        TB = _round_up(pl.cdiv(B, 2), LANE)
    else:
        TB = B                                         # single full block
    n_steps = pl.cdiv(B, TB)
    grid = (n_steps,)
    # Pad only the (tiny) OUTPUT so every store is full/aligned; the ragged
    # last x block reads unspecified tail rows whose results land only in this
    # sliced-off tail -- keep that invariant if changing the tiling.
    B_out = n_steps * TB

    flops = 2 * B * (F * Hp + Hp * H2p + H2p)
    bytes_accessed = (x.size * xitem + w1.size * 2 + w2.size * 2 + w3.size * 2
                      + (b1.size + b2.size + b3.size) * 4 + B_out * 4)

    def build(single_buffer_residents):
        def resident(a):
            # Constant index_map => block is DMA'd once and stays resident;
            # a single buffer halves its VMEM footprint.
            if single_buffer_residents:
                return pl.BlockSpec(a.shape, lambda i: (0, 0),
                                    pipeline_mode=pl.Buffered(1))
            return pl.BlockSpec(a.shape, lambda i: (0, 0))

        return pl.pallas_call(
            adversarial_adapter_kernel,
            out_shape=jax.ShapeDtypeStruct((1, B_out), jnp.float32),
            grid=grid,
            in_specs=[
                # x: streamed in native dtype, default double-buffering
                # (pl.Buffered(3) is a sweep candidate once TB is tuned).
                pl.BlockSpec((TB, F), lambda i: (i, 0)),
                resident(w1), resident(b1),
                resident(w2), resident(b2),
                resident(w3),
                pl.BlockSpec(memory_space=pltpu.MemorySpace.SMEM),   # b3
            ],
            out_specs=pl.BlockSpec((1, TB), lambda i: (0, i)),       # lane-dense
            compiler_params=pltpu.CompilerParams(
                dimension_semantics=("parallel",),
                vmem_limit_bytes=int(vmem_budget)),
            cost_estimate=pl.CostEstimate(flops=flops,
                                          transcendentals=B,
                                          bytes_accessed=bytes_accessed),
        )

    args = (x, w1, b1, w2, b2, w3, b3)
    try:
        out = jax.block_until_ready(build(True)(*args))
    except Exception:
        # pipeline_mode=pl.Buffered(1) not supported by this jax/Mosaic
        # version: fall back to default double-buffered resident blocks.
        out = build(False)(*args)

    return out[0, :B].reshape(B, 1)


def init_params(key, in_feature, hidden_size):
    """Synthetic init matching the nn.Linear shapes, stored in (in, out) layout."""
    h2 = hidden_size // 2
    k1, k2, k3, k4, k5, k6 = jax.random.split(key, 6)
    s1 = 1.0 / jnp.sqrt(in_feature)
    s2 = 1.0 / jnp.sqrt(hidden_size)
    s3 = 1.0 / jnp.sqrt(h2)
    u = lambda k, shape, s: jax.random.uniform(k, shape, jnp.float32, -s, s)
    return {
        "w1": u(k1, (in_feature, hidden_size), s1),
        "b1": u(k2, (1, hidden_size), s1),
        "w2": u(k3, (hidden_size, h2), s2),
        "b2": u(k4, (1, h2), s2),
        "w3": u(k5, (h2, 1), s3),
        "b3": u(k6, (1, 1), s3),
    }


def reference_forward(x, params):
    """Pure-JAX reference with the kernel's bf16-input / f32-accumulate contract."""
    f32, bf16 = jnp.float32, jnp.bfloat16
    hi = lax.Precision.HIGHEST
    xb = x.astype(bf16).astype(f32)
    w1 = params["w1"].astype(bf16).astype(f32)
    w2 = params["w2"].astype(bf16).astype(f32)
    w3 = params["w3"].astype(bf16).astype(f32)
    h1 = jnp.maximum(jnp.dot(xb, w1, precision=hi) + params["b1"], 0.0)
    h1 = h1.astype(bf16).astype(f32)
    h2 = jnp.maximum(jnp.dot(h1, w2, precision=hi) + params["b2"], 0.0)
    h2 = h2.astype(bf16).astype(f32)
    logit = jnp.dot(h2, w3, precision=hi) + params["b3"]
    return jax.nn.sigmoid(logit)


if __name__ == "__main__":
    key = jax.random.PRNGKey(0)
    kx, kp, kx2, kp2 = jax.random.split(key, 4)

    # Case 1: small shapes consistent with the module (batch=16, in_feature=32,
    # hidden=32 -> hidden//2=16); single full-array block.
    B, IN_FEATURE, HIDDEN = 16, 32, 32
    x = jax.random.normal(kx, (B, IN_FEATURE), dtype=jnp.float32)
    params = init_params(kp, IN_FEATURE, HIDDEN)
    y = jax.block_until_ready(adversarial_adapter_forward(x, params))
    ref = reference_forward(x, params)
    assert y.shape == (B, 1)
    assert jnp.allclose(y, ref, atol=1e-3), "mismatch vs reference (small case)"

    # Case 2: multi-step grid with a ragged final block (B=300, TB=128 ->
    # grid=3): exercises the un-padded x stream, the padded lane-dense output
    # and the index maps.
    B2, F2, HID2 = 300, 64, 64
    x2 = jax.random.normal(kx2, (B2, F2), dtype=jnp.float32)
    params2 = init_params(kp2, F2, HID2)
    y2 = jax.block_until_ready(
        adversarial_adapter_forward(x2, params2, tb_override=128))
    ref2 = reference_forward(x2, params2)
    assert y2.shape == (B2, 1)
    assert jnp.allclose(y2, ref2, atol=1e-3), "mismatch vs reference (tiled case)"

    # TODO(synk): GradientReverseLayer's gradient reversal / iter_num stepping
    # and Dropout masking are training-only; the eval forward is identity for
    # both, which is what this kernel implements.
    print("KERNEL_OK")
</pallas_src>

<mosaic_0001>
module attributes {stable_mosaic.version = 11 : i64} {
  func.func @adversarial_adapter_kernel(%arg0: i32, %arg1: memref<16x32xf32, #tpu.memory_space<vmem>>, %arg2: memref<32x128xbf16, #tpu.memory_space<vmem>>, %arg3: memref<1x128xf32, #tpu.memory_space<vmem>>, %arg4: memref<128x128xbf16, #tpu.memory_space<vmem>>, %arg5: memref<1x128xf32, #tpu.memory_space<vmem>>, %arg6: memref<1x128xbf16, #tpu.memory_space<vmem>>, %arg7: memref<1x1xf32, #tpu.memory_space<smem>>, %arg8: memref<1x16xf32, #tpu.memory_space<vmem>>) attributes {dimension_semantics = [#tpu.dimension_semantics<parallel>], iteration_bounds = array<i64: 1>, scalar_prefetch = 0 : i64, scratch_operands = 0 : i64, tpu.core_type = #tpu.core_type<tc>, window_params = [{transform_indices = @transform_0, window_bounds = array<i64: 16, 32>}, {pipeline_mode = #tpu.pipeline_mode<synchronous>, transform_indices = @transform_1, window_bounds = array<i64: 32, 128>}, {pipeline_mode = #tpu.pipeline_mode<synchronous>, transform_indices = @transform_2, window_bounds = array<i64: 1, 128>}, {pipeline_mode = #tpu.pipeline_mode<synchronous>, transform_indices = @transform_3, window_bounds = array<i64: 128, 128>}, {pipeline_mode = #tpu.pipeline_mode<synchronous>, transform_indices = @transform_4, window_bounds = array<i64: 1, 128>}, {pipeline_mode = #tpu.pipeline_mode<synchronous>, transform_indices = @transform_5, window_bounds = array<i64: 1, 128>}, {transform_indices = @transform_6, window_bounds = array<i64: 1, 1>}, {transform_indices = @transform_7, window_bounds = array<i64: 1, 16>}]} {
    %c0 = arith.constant 0 : index
    %c0_0 = arith.constant 0 : index
    %0 = vector.load %arg1[%c0, %c0_0] : memref<16x32xf32, #tpu.memory_space<vmem>>, vector<16x32xf32>
    %1 = arith.truncf %0 : vector<16x32xf32> to vector<16x32xbf16>
    %c0_1 = arith.constant 0 : index
    %c0_2 = arith.constant 0 : index
    %2 = vector.load %arg2[%c0_1, %c0_2] : memref<32x128xbf16, #tpu.memory_space<vmem>>, vector<32x128xbf16>
    %cst = arith.constant dense<0.000000e+00> : vector<16x128xf32>
    %3 = tpu.matmul %1, %2, %cst {dimension_numbers = #tpu.dot_dimension_numbers<[1], [0], [0], [1], [0, 0, 1, 1], [], []>} : vector<16x32xbf16>, vector<32x128xbf16>, vector<16x128xf32> -> vector<16x128xf32>
    %c0_3 = arith.constant 0 : index
    %c0_4 = arith.constant 0 : index
    %4 = vector.load %arg3[%c0_3, %c0_4] : memref<1x128xf32, #tpu.memory_space<vmem>>, vector<1x128xf32>
    %5 = vector.broadcast %4 : vector<1x128xf32> to vector<16x128xf32>
    %6 = arith.addf %3, %5 : vector<16x128xf32>
    %cst_5 = arith.constant 0.000000e+00 : f32
    %7 = vector.broadcast %cst_5 : f32 to vector<16x128xf32>
    %8 = arith.maximumf %6, %7 : vector<16x128xf32>
    %9 = arith.truncf %8 : vector<16x128xf32> to vector<16x128xbf16>
    %c0_6 = arith.constant 0 : index
    %c0_7 = arith.constant 0 : index
    %10 = vector.load %arg4[%c0_6, %c0_7] : memref<128x128xbf16, #tpu.memory_space<vmem>>, vector<128x128xbf16>
    %cst_8 = arith.constant dense<0.000000e+00> : vector<16x128xf32>
    %11 = tpu.matmul %9, %10, %cst_8 {dimension_numbers = #tpu.dot_dimension_numbers<[1], [0], [0], [1], [0, 0, 1, 1], [], []>} : vector<16x128xbf16>, vector<128x128xbf16>, vector<16x128xf32> -> vector<16x128xf32>
    %c0_9 = arith.constant 0 : index
    %c0_10 = arith.constant 0 : index
    %12 = vector.load %arg5[%c0_9, %c0_10] : memref<1x128xf32, #tpu.memory_space<vmem>>, vector<1x128xf32>
    %13 = vector.broadcast %12 : vector<1x128xf32> to vector<16x128xf32>
    %14 = arith.addf %11, %13 : vector<16x128xf32>
    %cst_11 = arith.constant 0.000000e+00 : f32
    %15 = vector.broadcast %cst_11 : f32 to vector<16x128xf32>
    %16 = arith.maximumf %14, %15 : vector<16x128xf32>
    %c0_12 = arith.constant 0 : index
    %c0_13 = arith.constant 0 : index
    %17 = vector.load %arg6[%c0_12, %c0_13] : memref<1x128xbf16, #tpu.memory_space<vmem>>, vector<1x128xbf16>
    %18 = arith.truncf %16 : vector<16x128xf32> to vector<16x128xbf16>
    %cst_14 = arith.constant dense<0.000000e+00> : vector<1x16xf32>
    %19 = tpu.matmul %17, %18, %cst_14 {dimension_numbers = #tpu.dot_dimension_numbers<[1], [1], [0], [0], [0, 0, 1, 0], [], []>} : vector<1x128xbf16>, vector<16x128xbf16>, vector<1x16xf32> -> vector<1x16xf32>
    %c0_15 = arith.constant 0 : index
    %c0_16 = arith.constant 0 : index
    %20 = memref.load %arg7[%c0_15, %c0_16] : memref<1x1xf32, #tpu.memory_space<smem>>
    %21 = vector.broadcast %20 : f32 to vector<1x16xf32>
    %22 = arith.addf %19, %21 : vector<1x16xf32>
    %23 = arith.negf %22 : vector<1x16xf32>
    %24 = math.exp %23 : vector<1x16xf32>
    %cst_17 = arith.constant 1.000000e+00 : f32
    %25 = vector.broadcast %cst_17 : f32 to vector<1x16xf32>
    %26 = arith.addf %25, %24 : vector<1x16xf32>
    %27 = arith.divf %25, %26 : vector<1x16xf32>
    %c0_18 = arith.constant 0 : index
    %c0_19 = arith.constant 0 : index
    %28 = vector.load %arg8[%c0_18, %c0_19] : memref<1x16xf32, #tpu.memory_space<vmem>>, vector<1x16xf32>
    tpu.vector_store %arg8[%c0_18, %c0_19], %27 {strides = array<i32>} : memref<1x16xf32, #tpu.memory_space<vmem>>, vector<1x16xf32>,
    return
  }
  func.func @transform_0(%arg0: i32) -> (i32, i32) {
    %c0_i32 = arith.constant 0 : i32
    %c0_i32_0 = arith.constant 0 : i32
    return %arg0, %c0_i32 : i32, i32
  }
  func.func @transform_1(%arg0: i32) -> (i32, i32) {
    %c0_i32 = arith.constant 0 : i32
    %c0_i32_0 = arith.constant 0 : i32
    %c0_i32_1 = arith.constant 0 : i32
    return %c0_i32, %c0_i32_0 : i32, i32
  }
  func.func @transform_2(%arg0: i32) -> (i32, i32) {
    %c0_i32 = arith.constant 0 : i32
    %c0_i32_0 = arith.constant 0 : i32
    %c0_i32_1 = arith.constant 0 : i32
    return %c0_i32, %c0_i32_0 : i32, i32
  }
  func.func @transform_3(%arg0: i32) -> (i32, i32) {
    %c0_i32 = arith.constant 0 : i32
    %c0_i32_0 = arith.constant 0 : i32
    %c0_i32_1 = arith.constant 0 : i32
    return %c0_i32, %c0_i32_0 : i32, i32
  }
  func.func @transform_4(%arg0: i32) -> (i32, i32) {
    %c0_i32 = arith.constant 0 : i32
    %c0_i32_0 = arith.constant 0 : i32
    %c0_i32_1 = arith.constant 0 : i32
    return %c0_i32, %c0_i32_0 : i32, i32
  }
  func.func @transform_5(%arg0: i32) -> (i32, i32) {
    %c0_i32 = arith.constant 0 : i32
    %c0_i32_0 = arith.constant 0 : i32
    %c0_i32_1 = arith.constant 0 : i32
    return %c0_i32, %c0_i32_0 : i32, i32
  }
  func.func @transform_6(%arg0: i32) -> (i32, i32) {
    %c0_i32 = arith.constant 0 : i32
    %c0_i32_0 = arith.constant 0 : i32
    %c0_i32_1 = arith.constant 0 : i32
    return %c0_i32, %c0_i32_0 : i32, i32
  }
  func.func @transform_7(%arg0: i32) -> (i32, i32) {
    %c0_i32 = arith.constant 0 : i32
    %c0_i32_0 = arith.constant 0 : i32
    return %c0_i32, %arg0 : i32, i32
  }
}

module attributes {stable_mosaic.version = 11 : i64} {
  func.func @adversarial_adapter_kernel(%arg0: i32, %arg1: memref<16x32xf32, #tpu.memory_space<vmem>>, %arg2: memref<32x128xbf16, #tpu.memory_space<vmem>>, %arg3: memref<1x128xf32, #tpu.memory_space<vmem>>, %arg4: memref<128x128xbf16, #tpu.memory_space<vmem>>, %arg5: memref<1x128xf32, #tpu.memory_space<vmem>>, %arg6: memref<1x128xbf16, #tpu.memory_space<vmem>>, %arg7: memref<1x1xf32, #tpu.memory_space<smem>>, %arg8: memref<1x16xf32, #tpu.memory_space<vmem>>) attributes {dimension_semantics = [#tpu.dimension_semantics<parallel>], iteration_bounds = array<i64: 1>, scalar_prefetch = 0 : i64, scratch_operands = 0 : i64, tpu.core_type = #tpu.core_type<tc>, window_params = [{transform_indices = @transform_0, window_bounds = array<i64: 16, 32>}, {pipeline_mode = #tpu.pipeline_mode<synchronous>, transform_indices = @transform_1, window_bounds = array<i64: 32, 128>}, {pipeline_mode = #tpu.pipeline_mode<synchronous>, transform_indices = @transform_2, window_bounds = array<i64: 1, 128>}, {pipeline_mode = #tpu.pipeline_mode<synchronous>, transform_indices = @transform_3, window_bounds = array<i64: 128, 128>}, {pipeline_mode = #tpu.pipeline_mode<synchronous>, transform_indices = @transform_4, window_bounds = array<i64: 1, 128>}, {pipeline_mode = #tpu.pipeline_mode<synchronous>, transform_indices = @transform_5, window_bounds = array<i64: 1, 128>}, {transform_indices = @transform_6, window_bounds = array<i64: 1, 1>}, {transform_indices = @transform_7, window_bounds = array<i64: 1, 16>}]} {
    %c0 = arith.constant 0 : index
    %c0_0 = arith.constant 0 : index
    %0 = vector.load %arg1[%c0, %c0_0] : memref<16x32xf32, #tpu.memory_space<vmem>>, vector<16x32xf32>
    %1 = arith.truncf %0 : vector<16x32xf32> to vector<16x32xbf16>
    %c0_1 = arith.constant 0 : index
    %c0_2 = arith.constant 0 : index
    %2 = vector.load %arg2[%c0_1, %c0_2] : memref<32x128xbf16, #tpu.memory_space<vmem>>, vector<32x128xbf16>
    %cst = arith.constant dense<0.000000e+00> : vector<16x128xf32>
    %3 = tpu.matmul %1, %2, %cst {dimension_numbers = #tpu.dot_dimension_numbers<[1], [0], [0], [1], [0, 0, 1, 1], [], []>} : vector<16x32xbf16>, vector<32x128xbf16>, vector<16x128xf32> -> vector<16x128xf32>
    %c0_3 = arith.constant 0 : index
    %c0_4 = arith.constant 0 : index
    %4 = vector.load %arg3[%c0_3, %c0_4] : memref<1x128xf32, #tpu.memory_space<vmem>>, vector<1x128xf32>
    %5 = vector.broadcast %4 : vector<1x128xf32> to vector<16x128xf32>
    %6 = arith.addf %3, %5 : vector<16x128xf32>
    %cst_5 = arith.constant 0.000000e+00 : f32
    %7 = vector.broadcast %cst_5 : f32 to vector<16x128xf32>
    %8 = arith.maximumf %6, %7 : vector<16x128xf32>
    %9 = arith.truncf %8 : vector<16x128xf32> to vector<16x128xbf16>
    %c0_6 = arith.constant 0 : index
    %c0_7 = arith.constant 0 : index
    %10 = vector.load %arg4[%c0_6, %c0_7] : memref<128x128xbf16, #tpu.memory_space<vmem>>, vector<128x128xbf16>
    %cst_8 = arith.constant dense<0.000000e+00> : vector<16x128xf32>
    %11 = tpu.matmul %9, %10, %cst_8 {dimension_numbers = #tpu.dot_dimension_numbers<[1], [0], [0], [1], [0, 0, 1, 1], [], []>} : vector<16x128xbf16>, vector<128x128xbf16>, vector<16x128xf32> -> vector<16x128xf32>
    %c0_9 = arith.constant 0 : index
    %c0_10 = arith.constant 0 : index
    %12 = vector.load %arg5[%c0_9, %c0_10] : memref<1x128xf32, #tpu.memory_space<vmem>>, vector<1x128xf32>
    %13 = vector.broadcast %12 : vector<1x128xf32> to vector<16x128xf32>
    %14 = arith.addf %11, %13 : vector<16x128xf32>
    %cst_11 = arith.constant 0.000000e+00 : f32
    %15 = vector.broadcast %cst_11 : f32 to vector<16x128xf32>
    %16 = arith.maximumf %14, %15 : vector<16x128xf32>
    %c0_12 = arith.constant 0 : index
    %c0_13 = arith.constant 0 : index
    %17 = vector.load %arg6[%c0_12, %c0_13] : memref<1x128xbf16, #tpu.memory_space<vmem>>, vector<1x128xbf16>
    %18 = arith.truncf %16 : vector<16x128xf32> to vector<16x128xbf16>
    %cst_14 = arith.constant dense<0.000000e+00> : vector<1x16xf32>
    %19 = tpu.matmul %17, %18, %cst_14 {dimension_numbers = #tpu.dot_dimension_numbers<[1], [1], [0], [0], [0, 0, 1, 0], [], []>} : vector<1x128xbf16>, vector<16x128xbf16>, vector<1x16xf32> -> vector<1x16xf32>
    %c0_15 = arith.constant 0 : index
    %c0_16 = arith.constant 0 : index
    %20 = memref.load %arg7[%c0_15, %c0_16] : memref<1x1xf32, #tpu.memory_space<smem>>
    %21 = vector.broadcast %20 : f32 to vector<1x16xf32>
    %22 = arith.addf %19, %21 : vector<1x16xf32>
    %23 = arith.negf %22 : vector<1x16xf32>
    %24 = math.exp %23 : vector<1x16xf32>
    %cst_17 = arith.constant 1.000000e+00 : f32
    %25 = vector.broadcast %cst_17 : f32 to vector<1x16xf32>
    %26 = arith.addf %25, %24 : vector<1x16xf32>
    %27 = arith.divf %25, %26 : vector<1x16xf32>
    %c0_18 = arith.constant 0 : index
    %c0_19 = arith.constant 0 : index
    %28 = vector.load %arg8[%c0_18, %c0_19] : memref<1x16xf32, #tpu.memory_space<vmem>>, vector<1x16xf32>
    tpu.vector_store %arg8[%c0_18, %c0_19], %27 {strides = array<i32>} : memref<1x16xf32, #tpu.memory_space<vmem>>, vector<1x16xf32>,
    return
  }
  func.func @transform_0(%arg0: i32) -> (i32, i32) {
    %c0_i32 = arith.constant 0 : i32
    %c0_i32_0 = arith.constant 0 : i32
    return %arg0, %c0_i32 : i32, i32
  }
  func.func @transform_1(%arg0: i32) -> (i32, i32) {
    %c0_i32 = arith.constant 0 : i32
    %c0_i32_0 = arith.constant 0 : i32
    %c0_i32_1 = arith.constant 0 : i32
    return %c0_i32, %c0_i32_0 : i32, i32
  }
  func.func @transform_2(%arg0: i32) -> (i32, i32) {
    %c0_i32 = arith.constant 0 : i32
    %c0_i32_0 = arith.constant 0 : i32
    %c0_i32_1 = arith.constant 0 : i32
    return %c0_i32, %c0_i32_0 : i32, i32
  }
  func.func @transform_3(%arg0: i32) -> (i32, i32) {
    %c0_i32 = arith.constant 0 : i32
    %c0_i32_0 = arith.constant 0 : i32
    %c0_i32_1 = arith.constant 0 : i32
    return %c0_i32, %c0_i32_0 : i32, i32
  }
  func.func @transform_4(%arg0: i32) -> (i32, i32) {
    %c0_i32 = arith.constant 0 : i32
    %c0_i32_0 = arith.constant 0 : i32
    %c0_i32_1 = arith.constant 0 : i32
    return %c0_i32, %c0_i32_0 : i32, i32
  }
  func.func @transform_5(%arg0: i32) -> (i32, i32) {
    %c0_i32 = arith.constant 0 : i32
    %c0_i32_0 = arith.constant 0 : i32
    %c0_i32_1 = arith.constant 0 : i32
    return %c0_i32, %c0_i32_0 : i32, i32
  }
  func.func @transform_6(%arg0: i32) -> (i32, i32) {
    %c0_i32 = arith.constant 0 : i32
    %c0_i32_0 = arith.constant 0 : i32
    %c0_i32_1 = arith.constant 0 : i32
    return %c0_i32, %c0_i32_0 : i32, i32
  }
  func.func @transform_7(%arg0: i32) -> (i32, i32) {
    %c0_i32 = arith.constant 0 : i32
    %c0_i32_0 = arith.constant 0 : i32
    return %c0_i32, %arg0 : i32, i32
  }
}

</mosaic_0001>

<llo_original>
// kernel: tpu_custom_call.1
$region0: #{tpu_custom_call.1}
  #allocation0 [shape = 'u32[]', space=smem, size = 0x4, offset = 0x4, fixed_abs, tag = 'smem constant byte address 0x4 - core index']
  #allocation1 [shape = 'u32[144,128]{1,0:T(1,128)}', space=vmem, size = 0x12000, scoped, tag = 'internal scratch']
  #allocation2 [shape = 'f32[1,1]{1,0:T(1,128)S(6)}', space=smem, size = 0x200, scoped, tag = 'scoped memory for tpu_custom_call.1']
  %s0 = inlined_call_operand.hbm [shape: f32[16,32], index: 0, kind: input, shape index: {}]
  %s1 = inlined_call_operand.hbm [shape: bf16[32,128], index: 1, kind: input, shape index: {}]
  %s2 = inlined_call_operand.vmem [shape: f32[1,128], index: 2, kind: input, shape index: {}]
  %s3 = inlined_call_operand.hbm [shape: bf16[128,128], index: 3, kind: input, shape index: {}]
  %s4 = inlined_call_operand.vmem [shape: f32[1,128], index: 4, kind: input, shape index: {}]
  %s5 = inlined_call_operand.vmem [shape: bf16[1,128], index: 5, kind: input, shape index: {}]
  %s6 = inlined_call_operand.<no memory space> [shape: f32[1,1], index: 6, kind: input, shape index: {}]
  %s7 = inlined_call_operand.hbm [shape: f32[1,16], index: 7, kind: output, shape index: {}]
  %s8 = sld [smem:[#allocation0]]
  $region50: #{tpu_custom_call.1} parent=0
    _
  %s10 = ssub.s32 1, %s8
  %s11 = scalar_select 0, %s10, %s8
  %12 = sst [smem:[#allocation2]] %s6
  $region1: #{tpu_custom_call.1} parent=0
    #allocation3 [shape = 'u8[8192]{0}', space=vmem, size = 0x2000, scoped, tag = 'input window, operand 0, single buffered']
    #allocation4 [shape = 's32[1]{0}', space=sflag, size = 0x4, scoped, tag = 'scoped memory for tpu_custom_call.1']
    #allocation5 [shape = 's32[1]{0}', space=sflag, size = 0x4, scoped, tag = 'scoped memory for tpu_custom_call.1']
    #allocation6 [shape = 'u8[8192]{0}', space=vmem, size = 0x2000, scoped, tag = 'input window, operand 1, single buffered']
    #allocation7 [shape = 's32[1]{0}', space=sflag, size = 0x4, scoped, tag = 'scoped memory for tpu_custom_call.1']
    #allocation8 [shape = 'u8[32768]{0}', space=vmem, size = 0x8000, scoped, tag = 'input window, operand 3, single buffered']
    #allocation9 [shape = 'u8[512]{0}', space=vmem, size = 0x400, scoped, tag = 'output window, operand 0, single buffered']
    %13 = vsyncpa [#allocation4], 0
    %14 = vsyncpa [#allocation7], 0
    %15 = vsyncpa [#allocation5], 0
    // Predicated region
    $region2: #{tpu_custom_call.1} parent=1 // pred_check
      _
    $region3: #{tpu_custom_call.1} parent=1 // pred_check_branch
      %17 = sbr.rel (0) target = $region5
    $region4: #{tpu_custom_call.1} parent=1 // pred_region
      %s19 = ssub.s32 256, 256
      %20 = vsyncadd [#allocation4], %s19
      %s21 = sshll.u32 [#allocation3], 4
      %s22 = int_to_ptr.vmem [resolvable:$true] %s21
      %27 = dma.hbm_to_vmem [thread:$0]  %s0, 256, %s22, [#allocation4], 128, 128, 8
    $region5: #{tpu_custom_call.1} parent=1 // pred_fallthru
      _
    // Predicated region
    $region6: #{tpu_custom_call.1} parent=1 // pred_check
      _
    $region7: #{tpu_custom_call.1} parent=1 // pred_check_branch
      %29 = sbr.rel (0) target = $region9
    $region8: #{tpu_custom_call.1} parent=1 // pred_region
      %s31 = ssub.s32 256, 256
      %32 = vsyncadd [#allocation7], %s31
      %s33 = sshll.u32 [#allocation6], 4
      %s34 = int_to_ptr.vmem [resolvable:$true] %s33
      %39 = dma.hbm_to_vmem [thread:$0]  %s1, 256, %s34, [#allocation7], 64, 64, 4
    $region9: #{tpu_custom_call.1} parent=1 // pred_fallthru
      _
    // Predicated region
    $region10: #{tpu_custom_call.1} parent=1 // pred_check
      _
    $region11: #{tpu_custom_call.1} parent=1 // pred_check_branch
      %41 = sbr.rel (0) target = $region13
    $region12: #{tpu_custom_call.1} parent=1 // pred_region
      _
    $region13: #{tpu_custom_call.1} parent=1 // pred_fallthru
      _
    // Predicated region
    $region14: #{tpu_custom_call.1} parent=1 // pred_check
      _
    $region15: #{tpu_custom_call.1} parent=1 // pred_check_branch
      %43 = sbr.rel (0) target = $region17
    $region16: #{tpu_custom_call.1} parent=1 // pred_region
      %s45 = ssub.s32 1024, 1024
      %46 = vsyncadd [#allocation7], %s45
      %s47 = sshll.u32 [#allocation8], 4
      %s48 = int_to_ptr.vmem [resolvable:$true] %s47
      %53 = dma.hbm_to_vmem [thread:$0]  %s3, 1024, %s48, [#allocation7], 64, 64, 4
    $region17: #{tpu_custom_call.1} parent=1 // pred_fallthru
      _
    // Predicated region
    $region18: #{tpu_custom_call.1} parent=1 // pred_check
      _
    $region19: #{tpu_custom_call.1} parent=1 // pred_check_branch
      %55 = sbr.rel (0) target = $region21
    $region20: #{tpu_custom_call.1} parent=1 // pred_region
      _
    $region21: #{tpu_custom_call.1} parent=1 // pred_fallthru
      _
    // Predicated region
    $region22: #{tpu_custom_call.1} parent=1 // pred_check
      _
    $region23: #{tpu_custom_call.1} parent=1 // pred_check_branch
      %57 = sbr.rel (0) target = $region25
    $region24: #{tpu_custom_call.1} parent=1 // pred_region
      _
    $region25: #{tpu_custom_call.1} parent=1 // pred_fallthru
      _
    // Predicated region
    $region26: #{tpu_custom_call.1} parent=1 // pred_check
      _
    $region27: #{tpu_custom_call.1} parent=1 // pred_check_branch
      %59 = sbr.rel (0) target = $region29
    $region28: #{tpu_custom_call.1} parent=1 // pred_region
      _
    $region29: #{tpu_custom_call.1} parent=1 // pred_fallthru
      _
    // Predicated region
    $region30: #{tpu_custom_call.1} parent=1 // pred_check
      _
    $region31: #{tpu_custom_call.1} parent=1 // pred_check_branch
      %61 = sbr.rel (0) target = $region33
    $region32: #{tpu_custom_call.1} parent=1 // pred_region
      %62 = dma.done [#allocation4], 256
    $region33: #{tpu_custom_call.1} parent=1 // pred_fallthru
      _
    // Predicated region
    $region34: #{tpu_custom_call.1} parent=1 // pred_check
      _
    $region35: #{tpu_custom_call.1} parent=1 // pred_check_branch
      %64 = sbr.rel (0) target = $region37
    $region36: #{tpu_custom_call.1} parent=1 // pred_region
      %65 = dma.done [#allocation7], 256
    $region37: #{tpu_custom_call.1} parent=1 // pred_fallthru
      _
    // Predicated region
    $region38: #{tpu_custom_call.1} parent=1 // pred_check
      _
    $region39: #{tpu_custom_call.1} parent=1 // pred_check_branch
      %67 = sbr.rel (0) target = $region41
    $region40: #{tpu_custom_call.1} parent=1 // pred_region
      %68 = dma.done [#allocation7], 1024
    $region41: #{tpu_custom_call.1} parent=1 // pred_fallthru
      _
    %v70 = vld [vmem:[#allocation3] sm:$0xff]
    %v71 = vld [vmem:[#allocation3 + $0x8] sm:$0xff]
    %v72 = vpack.c.bf16 %v71, %v70
    %v73 = vld [vmem:[#allocation6] sm:$0xf]
    %v74 = vld [vmem:[#allocation6 + $0x4] sm:$0xf]
    %v75 = vld [vmem:[#allocation6 + $0x8] sm:$0xf]
    %v76 = vld [vmem:[#allocation6 + $0xc] sm:$0xf]
    %v77 = vld [vmem:[%s2] sm:$0x1]
    %v79 = vlaneseq
    %v80 = vshrl.u32 %v79, 7
    %v81 = vsub.s32 0, %v80
    %v82 = vrot.slane %v77, %v81
    %v88 = vunpack.c.l.b16 %v73
    %v89 = vunpack.c.l.b16 %v74
    %v90 = vunpack.c.l.b16 %v75
    %v91 = vunpack.c.l.b16 %v76
    %v92 = vpack.c.b16 %v89, %v88
    %v93 = vpack.c.b16 %v91, %v90
    %vm96 = vcmask 261120
    %v98 = vsel %vm96, %v72, 0
    %100 = vmatprep.subr.bf16.mxu0 0
    %101 = vmatpush1.bf16.msra.mxu0 %v92
    %102 = vmatprep.subr.bf16.mxu0 0
    %103 = vmatpush1.bf16.msra.mxu0 %v93
    %104 = vmatprep.subr.bf16.mxu0 0
    %105 = vmatpush1.bf16.msra.mxu0 0
    %106 = vmatprep.subr.bf16.mxu0 0
    %107 = vmatpush1.bf16.msra.mxu0 0
    %108 = vmatprep.subr.bf16.mxu0 0
    %109 = vmatpush1.bf16.msra.mxu0 0
    %110 = vmatprep.subr.bf16.mxu0 0
    %111 = vmatpush1.bf16.msra.mxu0 0
    %112 = vmatprep.subr.bf16.mxu0 0
    %113 = vmatpush1.bf16.msra.mxu0 0
    %114 = vmatprep.subr.bf16.mxu0 0
    %115 = vmatpush1.bf16.msra.mxu0 0
    %116 = vmatprep.subr.bf16.mxu0 0
    %117 = vmatpush1.bf16.msra.mxu0 0
    %118 = vmatprep.subr.bf16.mxu0 0
    %119 = vmatpush1.bf16.msra.mxu0 0
    %120 = vmatprep.subr.bf16.mxu0 0
    %121 = vmatpush1.bf16.msra.mxu0 0
    %122 = vmatprep.subr.bf16.mxu0 0
    %123 = vmatpush1.bf16.msra.mxu0 0
    %124 = vmatprep.subr.bf16.mxu0 0
    %125 = vmatpush1.bf16.msra.mxu0 0
    %126 = vmatprep.subr.bf16.mxu0 0
    %127 = vmatpush1.bf16.msra.mxu0 0
    %128 = vmatprep.subr.bf16.mxu0 0
    %129 = vmatpush1.bf16.msra.mxu0 0
    %130 = vmatprep.subr.bf16.mxu0 0
    %131 = vmatpush1.bf16.msra.mxu0 0
    %132 = vmatprep.mubr.bf16.mxu0 0
    %133 = vmatmul.mubr.bf16.gmra.mrb[0].mxu0 %v98
    %v134 = vpop.f32.mrb[0].mxu0
    %v135 = vadd.f32 %v82, %v134
    %v136 = vpop.f32.mrb[0].mxu0
    %v137 = vpop.f32.mrb[0].mxu0
    %v138 = vadd.f32 %v82, %v137
    %v139 = vpop.f32.mrb[0].mxu0
    %140 = vdwg.mxu0
    %v141 = vmax.f32 %v135, 0.0
    %v142 = vmax.f32 %v138, 0.0
    %v143 = vpack.c.bf16 %v142, %v141
    %v144 = vld [vmem:[#allocation8] sm:$0xf]
    %v145 = vld [vmem:[#allocation8 + $0x4] sm:$0xf]
    %v146 = vld [vmem:[#allocation8 + $0x8] sm:$0xf]
    %v147 = vld [vmem:[#allocation8 + $0xc] sm:$0xf]
    %v148 = vld [vmem:[#allocation8 + $0x10] sm:$0xf]
    %v149 = vld [vmem:[#allocation8 + $0x14] sm:$0xf]
    %v150 = vld [vmem:[#allocation8 + $0x18] sm:$0xf]
    %v151 = vld [vmem:[#allocation8 + $0x1c] sm:$0xf]
    %v152 = vld [vmem:[#allocation8 + $0x20] sm:$0xf]
    %v153 = vld [vmem:[#allocation8 + $0x24] sm:$0xf]
    %v154 = vld [vmem:[#allocation8 + $0x28] sm:$0xf]
    %v155 = vld [vmem:[#allocation8 + $0x2c] sm:$0xf]
    %v156 = vld [vmem:[#allocation8 + $0x30] sm:$0xf]
    %v157 = vld [vmem:[#allocation8 + $0x34] sm:$0xf]
    %v158 = vld [vmem:[#allocation8 + $0x38] sm:$0xf]
    %v159 = vld [vmem:[#allocation8 + $0x3c] sm:$0xf]
    %v160 = vld [vmem:[%s4] sm:$0x1]
    %v162 = vlaneseq
    %v163 = vshrl.u32 %v162, 7
    %v164 = vsub.s32 0, %v163
    %v165 = vrot.slane %v160, %v164
    %v183 = vunpack.c.l.b16 %v144
    %v184 = vunpack.c.l.b16 %v145
    %v185 = vunpack.c.l.b16 %v146
    %v186 = vunpack.c.l.b16 %v147
    %v187 = vunpack.c.l.b16 %v148
    %v188 = vunpack.c.l.b16 %v149
    %v189 = vunpack.c.l.b16 %v150
    %v190 = vunpack.c.l.b16 %v151
    %v191 = vunpack.c.l.b16 %v152
    %v192 = vunpack.c.l.b16 %v153
    %v193 = vunpack.c.l.b16 %v154
    %v194 = vunpack.c.l.b16 %v155
    %v195 = vunpack.c.l.b16 %v156
    %v196 = vunpack.c.l.b16 %v157
    %v197 = vunpack.c.l.b16 %v158
    %v198 = vunpack.c.l.b16 %v159
    %v199 = vpack.c.b16 %v184, %v183
    %v200 = vpack.c.b16 %v186, %v185
    %v201 = vpack.c.b16 %v188, %v187
    %v202 = vpack.c.b16 %v190, %v189
    %v203 = vpack.c.b16 %v192, %v191
    %v204 = vpack.c.b16 %v194, %v193
    %v205 = vpack.c.b16 %v196, %v195
    %v206 = vpack.c.b16 %v198, %v197
    %215 = vmatprep.subr.bf16.mxu0 0
    %216 = vmatpush1.bf16.msra.mxu0 %v199
    %217 = vmatprep.subr.bf16.mxu0 0
    %218 = vmatpush1.bf16.msra.mxu0 %v200
    %219 = vmatprep.subr.bf16.mxu0 0
    %220 = vmatpush1.bf16.msra.mxu0 %v201
    %221 = vmatprep.subr.bf16.mxu0 0
    %222 = vmatpush1.bf16.msra.mxu0 %v202
    %223 = vmatprep.subr.bf16.mxu0 0
    %224 = vmatpush1.bf16.msra.mxu0 %v203
    %225 = vmatprep.subr.bf16.mxu0 0
    %226 = vmatpush1.bf16.msra.mxu0 %v204
    %227 = vmatprep.subr.bf16.mxu0 0
    %228 = vmatpush1.bf16.msra.mxu0 %v205
    %229 = vmatprep.subr.bf16.mxu0 0
    %230 = vmatpush1.bf16.msra.mxu0 %v206
    %231 = vmatprep.subr.bf16.mxu0 0
    %232 = vmatpush1.bf16.msra.mxu0 0
    %233 = vmatprep.subr.bf16.mxu0 0
    %234 = vmatpush1.bf16.msra.mxu0 0
    %235 = vmatprep.subr.bf16.mxu0 0
    %236 = vmatpush1.bf16.msra.mxu0 0
    %237 = vmatprep.subr.bf16.mxu0 0
    %238 = vmatpush1.bf16.msra.mxu0 0
    %239 = vmatprep.subr.bf16.mxu0 0
    %240 = vmatpush1.bf16.msra.mxu0 0
    %241 = vmatprep.subr.bf16.mxu0 0
    %242 = vmatpush1.bf16.msra.mxu0 0
    %243 = vmatprep.subr.bf16.mxu0 0
    %244 = vmatpush1.bf16.msra.mxu0 0
    %245 = vmatprep.subr.bf16.mxu0 0
    %246 = vmatpush1.bf16.msra.mxu0 0
    %247 = vmatprep.mubr.bf16.mxu0 0
    %248 = vmatmul.mubr.bf16.gmra.mrb[0].mxu0 %v143
    %v249 = vpop.f32.mrb[0].mxu0
    %v250 = vadd.f32 %v165, %v249
    %v251 = vpop.f32.mrb[0].mxu0
    %v252 = vpop.f32.mrb[0].mxu0
    %v253 = vadd.f32 %v165, %v252
    %v254 = vpop.f32.mrb[0].mxu0
    %255 = vdwg.mxu0
    %v256 = vmax.f32 %v250, 0.0
    %v257 = vmax.f32 %v253, 0.0
    %v258 = vld [vmem:[%s5] sm:$0x1]
    %v259 = vpack.c.bf16 %v257, %v256
    %s260 = sld [smem:[#allocation2]]
    %v261 = vstv %s260
    %262 = vmatprep.subr.bf16.mxu0 0
    %263 = vmatpush1.bf16.xpose.msra.mxu0 %v259
    %264 = vmatprep.subr.bf16.mxu0 0
    %265 = vmatpush1.bf16.xpose.msra.mxu0 0
    %266 = vmatprep.subr.bf16.mxu0 0
    %267 = vmatpush1.bf16.xpose.msra.mxu0 0
    %268 = vmatprep.subr.bf16.mxu0 0
    %269 = vmatpush1.bf16.xpose.msra.mxu0 0
    %270 = vmatprep.subr.bf16.mxu0 0
    %271 = vmatpush1.bf16.xpose.msra.mxu0 0
    %272 = vmatprep.subr.bf16.mxu0 0
    %273 = vmatpush1.bf16.xpose.msra.mxu0 0
    %274 = vmatprep.subr.bf16.mxu0 0
    %275 = vmatpush1.bf16.xpose.msra.mxu0 0
    %276 = vmatprep.subr.bf16.mxu0 0
    %277 = vmatpush1.bf16.xpose.msra.mxu0 0
    %278 = vmatprep.subr.bf16.mxu0 0
    %279 = vmatpush1.bf16.xpose.msra.mxu0 0
    %280 = vmatprep.subr.bf16.mxu0 0
    %281 = vmatpush1.bf16.xpose.msra.mxu0 0
    %282 = vmatprep.subr.bf16.mxu0 0
    %283 = vmatpush1.bf16.xpose.msra.mxu0 0
    %284 = vmatprep.subr.bf16.mxu0 0
    %285 = vmatpush1.bf16.xpose.msra.mxu0 0
    %286 = vmatprep.subr.bf16.mxu0 0
    %287 = vmatpush1.bf16.xpose.msra.mxu0 0
    %288 = vmatprep.subr.bf16.mxu0 0
    %289 = vmatpush1.bf16.xpose.msra.mxu0 0
    %290 = vmatprep.subr.bf16.mxu0 0
    %291 = vmatpush1.bf16.xpose.msra.mxu0 0
    %292 = vmatprep.subr.bf16.mxu0 0
    %293 = vmatpush1.bf16.xpose.msra.mxu0 0
    %294 = vmatprep.mubr.bf16.mxu0 0
    %295 = vmatmul.mubr.bf16.gmra.mrb[0].mxu0 %v258
    %v296 = vpop.f32.mrb[0].mxu0
    %v297 = vadd.f32 %v261, %v296
    %v298 = vpop.f32.mrb[0].mxu0
    %v299 = vpop.f32.mrb[0].mxu0
    %v300 = vpop.f32.mrb[0].mxu0
    %301 = vdwg.mxu0
    %v302 = vxor.u32 %v297, 2147483648
    %v303 = vmul.f32 %v302, 1.442695
    %v304 = vpow.pop %v303
    %v305 = vadd.f32 %v304, 1.0
    %v306 = vrcp.pop %v305
    %v307 = vmul.f32 1.0, %v306
    %vm308 = vcmask 122880
    %309 = vst.msk [vmem:[#allocation9] sm:$0x1] %vm308, %v307
    // Predicated region
    $region42: #{tpu_custom_call.1} parent=1 // pred_check
      _
    $region43: #{tpu_custom_call.1} parent=1 // pred_check_branch
      %311 = sbr.rel (0) target = $region45
    $region44: #{tpu_custom_call.1} parent=1 // pred_region
      %s313 = ssub.s32 16, 16
      %314 = vsyncadd [#allocation5], %s313
      %s316 = sshll.u32 [#allocation9], 4
      %s317 = int_to_ptr.vmem [resolvable:$true] %s316
      %319 = dma.vmem_to_hbm [thread:$0]  %s317, 16, %s7, [#allocation5]
    $region45: #{tpu_custom_call.1} parent=1 // pred_fallthru
      _
    // Predicated region
    $region46: #{tpu_custom_call.1} parent=1 // pred_check
      _
    $region47: #{tpu_custom_call.1} parent=1 // pred_check_branch
      %321 = sbr.rel (0) target = $region49
    $region48: #{tpu_custom_call.1} parent=1 // pred_region
      %322 = dma.done [#allocation5], 16
    $region49: #{tpu_custom_call.1} parent=1 // pred_fallthru
      _
    %323 = vsyncpa [#allocation4], 1
    %324 = vsyncpa [#allocation7], 1
    %325 = vsyncpa [#allocation5], 1

// kernel: tpu_custom_call.1
$region0: #{tpu_custom_call.1}
  #allocation0 [shape = 'u32[]', space=smem, size = 0x4, offset = 0x4, fixed_abs, tag = 'smem constant byte address 0x4 - core index']
  #allocation1 [shape = 'u32[144,128]{1,0:T(1,128)}', space=vmem, size = 0x12000, scoped, tag = 'internal scratch']
  #allocation2 [shape = 'f32[1,1]{1,0:T(1,128)S(6)}', space=smem, size = 0x200, scoped, tag = 'scoped memory for tpu_custom_call.1']
  %s0 = inlined_call_operand.hbm [shape: f32[16,32], index: 0, kind: input, shape index: {}]
  %s1 = inlined_call_operand.hbm [shape: bf16[32,128], index: 1, kind: input, shape index: {}]
  %s2 = inlined_call_operand.vmem [shape: f32[1,128], index: 2, kind: input, shape index: {}]
  %s3 = inlined_call_operand.hbm [shape: bf16[128,128], index: 3, kind: input, shape index: {}]
  %s4 = inlined_call_operand.vmem [shape: f32[1,128], index: 4, kind: input, shape index: {}]
  %s5 = inlined_call_operand.vmem [shape: bf16[1,128], index: 5, kind: input, shape index: {}]
  %s6 = inlined_call_operand.<no memory space> [shape: f32[1,1], index: 6, kind: input, shape index: {}]
  %s7 = inlined_call_operand.hbm [shape: f32[1,16], index: 7, kind: output, shape index: {}]
  %s8 = sld [smem:[#allocation0]]
  $region50: #{tpu_custom_call.1} parent=0
    _
  %s10 = ssub.s32 1, %s8
  %s11 = scalar_select 0, %s10, %s8
  %12 = sst [smem:[#allocation2]] %s6
  $region1: #{tpu_custom_call.1} parent=0
    #allocation3 [shape = 'u8[8192]{0}', space=vmem, size = 0x2000, scoped, tag = 'input window, operand 0, single buffered']
    #allocation4 [shape = 's32[1]{0}', space=sflag, size = 0x4, scoped, tag = 'scoped memory for tpu_custom_call.1']
    #allocation5 [shape = 's32[1]{0}', space=sflag, size = 0x4, scoped, tag = 'scoped memory for tpu_custom_call.1']
    #allocation6 [shape = 'u8[8192]{0}', space=vmem, size = 0x2000, scoped, tag = 'input window, operand 1, single buffered']
    #allocation7 [shape = 's32[1]{0}', space=sflag, size = 0x4, scoped, tag = 'scoped memory for tpu_custom_call.1']
    #allocation8 [shape = 'u8[32768]{0}', space=vmem, size = 0x8000, scoped, tag = 'input window, operand 3, single buffered']
    #allocation9 [shape = 'u8[512]{0}', space=vmem, size = 0x400, scoped, tag = 'output window, operand 0, single buffered']
    %13 = vsyncpa [#allocation4], 0
    %14 = vsyncpa [#allocation7], 0
    %15 = vsyncpa [#allocation5], 0
    // Predicated region
    $region2: #{tpu_custom_call.1} parent=1 // pred_check
      _
    $region3: #{tpu_custom_call.1} parent=1 // pred_check_branch
      %17 = sbr.rel (0) target = $region5
    $region4: #{tpu_custom_call.1} parent=1 // pred_region
      %s19 = ssub.s32 256, 256
      %20 = vsyncadd [#allocation4], %s19
      %s21 = sshll.u32 [#allocation3], 4
      %s22 = int_to_ptr.vmem [resolvable:$true] %s21
      %27 = dma.hbm_to_vmem [thread:$0]  %s0, 256, %s22, [#allocation4], 128, 128, 8
    $region5: #{tpu_custom_call.1} parent=1 // pred_fallthru
      _
    // Predicated region
    $region6: #{tpu_custom_call.1} parent=1 // pred_check
      _
    $region7: #{tpu_custom_call.1} parent=1 // pred_check_branch
      %29 = sbr.rel (0) target = $region9
    $region8: #{tpu_custom_call.1} parent=1 // pred_region
      %s31 = ssub.s32 256, 256
      %32 = vsyncadd [#allocation7], %s31
      %s33 = sshll.u32 [#allocation6], 4
      %s34 = int_to_ptr.vmem [resolvable:$true] %s33
      %39 = dma.hbm_to_vmem [thread:$0]  %s1, 256, %s34, [#allocation7], 64, 64, 4
    $region9: #{tpu_custom_call.1} parent=1 // pred_fallthru
      _
    // Predicated region
    $region10: #{tpu_custom_call.1} parent=1 // pred_check
      _
    $region11: #{tpu_custom_call.1} parent=1 // pred_check_branch
      %41 = sbr.rel (0) target = $region13
    $region12: #{tpu_custom_call.1} parent=1 // pred_region
      _
    $region13: #{tpu_custom_call.1} parent=1 // pred_fallthru
      _
    // Predicated region
    $region14: #{tpu_custom_call.1} parent=1 // pred_check
      _
    $region15: #{tpu_custom_call.1} parent=1 // pred_check_branch
      %43 = sbr.rel (0) target = $region17
    $region16: #{tpu_custom_call.1} parent=1 // pred_region
      %s45 = ssub.s32 1024, 1024
      %46 = vsyncadd [#allocation7], %s45
      %s47 = sshll.u32 [#allocation8], 4
      %s48 = int_to_ptr.vmem [resolvable:$true] %s47
      %53 = dma.hbm_to_vmem [thread:$0]  %s3, 1024, %s48, [#allocation7], 64, 64, 4
    $region17: #{tpu_custom_call.1} parent=1 // pred_fallthru
      _
    // Predicated region
    $region18: #{tpu_custom_call.1} parent=1 // pred_check
      _
    $region19: #{tpu_custom_call.1} parent=1 // pred_check_branch
      %55 = sbr.rel (0) target = $region21
    $region20: #{tpu_custom_call.1} parent=1 // pred_region
      _
    $region21: #{tpu_custom_call.1} parent=1 // pred_fallthru
      _
    // Predicated region
    $region22: #{tpu_custom_call.1} parent=1 // pred_check
      _
    $region23: #{tpu_custom_call.1} parent=1 // pred_check_branch
      %57 = sbr.rel (0) target = $region25
    $region24: #{tpu_custom_call.1} parent=1 // pred_region
      _
    $region25: #{tpu_custom_call.1} parent=1 // pred_fallthru
      _
    // Predicated region
    $region26: #{tpu_custom_call.1} parent=1 // pred_check
      _
    $region27: #{tpu_custom_call.1} parent=1 // pred_check_branch
      %59 = sbr.rel (0) target = $region29
    $region28: #{tpu_custom_call.1} parent=1 // pred_region
      _
    $region29: #{tpu_custom_call.1} parent=1 // pred_fallthru
      _
    // Predicated region
    $region30: #{tpu_custom_call.1} parent=1 // pred_check
      _
    $region31: #{tpu_custom_call.1} parent=1 // pred_check_branch
      %61 = sbr.rel (0) target = $region33
    $region32: #{tpu_custom_call.1} parent=1 // pred_region
      %62 = dma.done [#allocation4], 256
    $region33: #{tpu_custom_call.1} parent=1 // pred_fallthru
      _
    // Predicated region
    $region34: #{tpu_custom_call.1} parent=1 // pred_check
      _
    $region35: #{tpu_custom_call.1} parent=1 // pred_check_branch
      %64 = sbr.rel (0) target = $region37
    $region36: #{tpu_custom_call.1} parent=1 // pred_region
      %65 = dma.done [#allocation7], 256
    $region37: #{tpu_custom_call.1} parent=1 // pred_fallthru
      _
    // Predicated region
    $region38: #{tpu_custom_call.1} parent=1 // pred_check
      _
    $region39: #{tpu_custom_call.1} parent=1 // pred_check_branch
      %67 = sbr.rel (0) target = $region41
    $region40: #{tpu_custom_call.1} parent=1 // pred_region
      %68 = dma.done [#allocation7], 1024
    $region41: #{tpu_custom_call.1} parent=1 // pred_fallthru
      _
    %v70 = vld [vmem:[#allocation3] sm:$0xff]
    %v71 = vld [vmem:[#allocation3 + $0x8] sm:$0xff]
    %v72 = vpack.c.bf16 %v71, %v70
    %v73 = vld [vmem:[#allocation6] sm:$0xf]
    %v74 = vld [vmem:[#allocation6 + $0x4] sm:$0xf]
    %v75 = vld [vmem:[#allocation6 + $0x8] sm:$0xf]
    %v76 = vld [vmem:[#allocation6 + $0xc] sm:$0xf]
    %v77 = vld [vmem:[%s2] sm:$0x1]
    %v79 = vlaneseq
    %v80 = vshrl.u32 %v79, 7
    %v81 = vsub.s32 0, %v80
    %v82 = vrot.slane %v77, %v81
    %v88 = vunpack.c.l.b16 %v73
    %v89 = vunpack.c.l.b16 %v74
    %v90 = vunpack.c.l.b16 %v75
    %v91 = vunpack.c.l.b16 %v76
    %v92 = vpack.c.b16 %v89, %v88
    %v93 = vpack.c.b16 %v91, %v90
    %vm96 = vcmask 261120
    %v98 = vsel %vm96, %v72, 0
    %100 = vmatprep.subr.bf16.mxu0 0
    %101 = vmatpush1.bf16.msra.mxu0 %v92
    %102 = vmatprep.subr.bf16.mxu0 0
    %103 = vmatpush1.bf16.msra.mxu0 %v93
    %104 = vmatprep.subr.bf16.mxu0 0
    %105 = vmatpush1.bf16.msra.mxu0 0
    %106 = vmatprep.subr.bf16.mxu0 0
    %107 = vmatpush1.bf16.msra.mxu0 0
    %108 = vmatprep.subr.bf16.mxu0 0
    %109 = vmatpush1.bf16.msra.mxu0 0
    %110 = vmatprep.subr.bf16.mxu0 0
    %111 = vmatpush1.bf16.msra.mxu0 0
    %112 = vmatprep.subr.bf16.mxu0 0
    %113 = vmatpush1.bf16.msra.mxu0 0
    %114 = vmatprep.subr.bf16.mxu0 0
    %115 = vmatpush1.bf16.msra.mxu0 0
    %116 = vmatprep.subr.bf16.mxu0 0
    %117 = vmatpush1.bf16.msra.mxu0 0
    %118 = vmatprep.subr.bf16.mxu0 0
    %119 = vmatpush1.bf16.msra.mxu0 0
    %120 = vmatprep.subr.bf16.mxu0 0
    %121 = vmatpush1.bf16.msra.mxu0 0
    %122 = vmatprep.subr.bf16.mxu0 0
    %123 = vmatpush1.bf16.msra.mxu0 0
    %124 = vmatprep.subr.bf16.mxu0 0
    %125 = vmatpush1.bf16.msra.mxu0 0
    %126 = vmatprep.subr.bf16.mxu0 0
    %127 = vmatpush1.bf16.msra.mxu0 0
    %128 = vmatprep.subr.bf16.mxu0 0
    %129 = vmatpush1.bf16.msra.mxu0 0
    %130 = vmatprep.subr.bf16.mxu0 0
    %131 = vmatpush1.bf16.msra.mxu0 0
    %132 = vmatprep.mubr.bf16.mxu0 0
    %133 = vmatmul.mubr.bf16.gmra.mrb[0].mxu0 %v98
    %v134 = vpop.f32.mrb[0].mxu0
    %v135 = vadd.f32 %v82, %v134
    %v136 = vpop.f32.mrb[0].mxu0
    %v137 = vpop.f32.mrb[0].mxu0
    %v138 = vadd.f32 %v82, %v137
    %v139 = vpop.f32.mrb[0].mxu0
    %140 = vdwg.mxu0
    %v141 = vmax.f32 %v135, 0.0
    %v142 = vmax.f32 %v138, 0.0
    %v143 = vpack.c.bf16 %v142, %v141
    %v144 = vld [vmem:[#allocation8] sm:$0xf]
    %v145 = vld [vmem:[#allocation8 + $0x4] sm:$0xf]
    %v146 = vld [vmem:[#allocation8 + $0x8] sm:$0xf]
    %v147 = vld [vmem:[#allocation8 + $0xc] sm:$0xf]
    %v148 = vld [vmem:[#allocation8 + $0x10] sm:$0xf]
    %v149 = vld [vmem:[#allocation8 + $0x14] sm:$0xf]
    %v150 = vld [vmem:[#allocation8 + $0x18] sm:$0xf]
    %v151 = vld [vmem:[#allocation8 + $0x1c] sm:$0xf]
    %v152 = vld [vmem:[#allocation8 + $0x20] sm:$0xf]
    %v153 = vld [vmem:[#allocation8 + $0x24] sm:$0xf]
    %v154 = vld [vmem:[#allocation8 + $0x28] sm:$0xf]
    %v155 = vld [vmem:[#allocation8 + $0x2c] sm:$0xf]
    %v156 = vld [vmem:[#allocation8 + $0x30] sm:$0xf]
    %v157 = vld [vmem:[#allocation8 + $0x34] sm:$0xf]
    %v158 = vld [vmem:[#allocation8 + $0x38] sm:$0xf]
    %v159 = vld [vmem:[#allocation8 + $0x3c] sm:$0xf]
    %v160 = vld [vmem:[%s4] sm:$0x1]
    %v162 = vlaneseq
    %v163 = vshrl.u32 %v162, 7
    %v164 = vsub.s32 0, %v163
    %v165 = vrot.slane %v160, %v164
    %v183 = vunpack.c.l.b16 %v144
    %v184 = vunpack.c.l.b16 %v145
    %v185 = vunpack.c.l.b16 %v146
    %v186 = vunpack.c.l.b16 %v147
    %v187 = vunpack.c.l.b16 %v148
    %v188 = vunpack.c.l.b16 %v149
    %v189 = vunpack.c.l.b16 %v150
    %v190 = vunpack.c.l.b16 %v151
    %v191 = vunpack.c.l.b16 %v152
    %v192 = vunpack.c.l.b16 %v153
    %v193 = vunpack.c.l.b16 %v154
    %v194 = vunpack.c.l.b16 %v155
    %v195 = vunpack.c.l.b16 %v156
    %v196 = vunpack.c.l.b16 %v157
    %v197 = vunpack.c.l.b16 %v158
    %v198 = vunpack.c.l.b16 %v159
    %v199 = vpack.c.b16 %v184, %v183
    %v200 = vpack.c.b16 %v186, %v185
    %v201 = vpack.c.b16 %v188, %v187
    %v202 = vpack.c.b16 %v190, %v189
    %v203 = vpack.c.b16 %v192, %v191
    %v204 = vpack.c.b16 %v194, %v193
    %v205 = vpack.c.b16 %v196, %v195
    %v206 = vpack.c.b16 %v198, %v197
    %215 = vmatprep.subr.bf16.mxu0 0
    %216 = vmatpush1.bf16.msra.mxu0 %v199
    %217 = vmatprep.subr.bf16.mxu0 0
    %218 = vmatpush1.bf16.msra.mxu0 %v200
    %219 = vmatprep.subr.bf16.mxu0 0
    %220 = vmatpush1.bf16.msra.mxu0 %v201
    %221 = vmatprep.subr.bf16.mxu0 0
    %222 = vmatpush1.bf16.msra.mxu0 %v202
    %223 = vmatprep.subr.bf16.mxu0 0
    %224 = vmatpush1.bf16.msra.mxu0 %v203
    %225 = vmatprep.subr.bf16.mxu0 0
    %226 = vmatpush1.bf16.msra.mxu0 %v204
    %227 = vmatprep.subr.bf16.mxu0 0
    %228 = vmatpush1.bf16.msra.mxu0 %v205
    %229 = vmatprep.subr.bf16.mxu0 0
    %230 = vmatpush1.bf16.msra.mxu0 %v206
    %231 = vmatprep.subr.bf16.mxu0 0
    %232 = vmatpush1.bf16.msra.mxu0 0
    %233 = vmatprep.subr.bf16.mxu0 0
    %234 = vmatpush1.bf16.msra.mxu0 0
    %235 = vmatprep.subr.bf16.mxu0 0
    %236 = vmatpush1.bf16.msra.mxu0 0
    %237 = vmatprep.subr.bf16.mxu0 0
    %238 = vmatpush1.bf16.msra.mxu0 0
    %239 = vmatprep.subr.bf16.mxu0 0
    %240 = vmatpush1.bf16.msra.mxu0 0
    %241 = vmatprep.subr.bf16.mxu0 0
    %242 = vmatpush1.bf16.msra.mxu0 0
    %243 = vmatprep.subr.bf16.mxu0 0
    %244 = vmatpush1.bf16.msra.mxu0 0
    %245 = vmatprep.subr.bf16.mxu0 0
    %246 = vmatpush1.bf16.msra.mxu0 0
    %247 = vmatprep.mubr.bf16.mxu0 0
    %248 = vmatmul.mubr.bf16.gmra.mrb[0].mxu0 %v143
    %v249 = vpop.f32.mrb[0].mxu0
    %v250 = vadd.f32 %v165, %v249
    %v251 = vpop.f32.mrb[0].mxu0
    %v252 = vpop.f32.mrb[0].mxu0
    %v253 = vadd.f32 %v165, %v252
    %v254 = vpop.f32.mrb[0].mxu0
    %255 = vdwg.mxu0
    %v256 = vmax.f32 %v250, 0.0
    %v257 = vmax.f32 %v253, 0.0
    %v258 = vld [vmem:[%s5] sm:$0x1]
    %v259 = vpack.c.bf16 %v257, %v256
    %s260 = sld [smem:[#allocation2]]
    %v261 = vstv %s260
    %262 = vmatprep.subr.bf16.mxu0 0
    %263 = vmatpush1.bf16.xpose.msra.mxu0 %v259
    %264 = vmatprep.subr.bf16.mxu0 0
    %265 = vmatpush1.bf16.xpose.msra.mxu0 0
    %266 = vmatprep.subr.bf16.mxu0 0
    %267 = vmatpush1.bf16.xpose.msra.mxu0 0
    %268 = vmatprep.subr.bf16.mxu0 0
    %269 = vmatpush1.bf16.xpose.msra.mxu0 0
    %270 = vmatprep.subr.bf16.mxu0 0
    %271 = vmatpush1.bf16.xpose.msra.mxu0 0
    %272 = vmatprep.subr.bf16.mxu0 0
    %273 = vmatpush1.bf16.xpose.msra.mxu0 0
    %274 = vmatprep.subr.bf16.mxu0 0
    %275 = vmatpush1.bf16.xpose.msra.mxu0 0
    %276 = vmatprep.subr.bf16.mxu0 0
    %277 = vmatpush1.bf16.xpose.msra.mxu0 0
    %278 = vmatprep.subr.bf16.mxu0 0
    %279 = vmatpush1.bf16.xpose.msra.mxu0 0
    %280 = vmatprep.subr.bf16.mxu0 0
    %281 = vmatpush1.bf16.xpose.msra.mxu0 0
    %282 = vmatprep.subr.bf16.mxu0 0
    %283 = vmatpush1.bf16.xpose.msra.mxu0 0
    %284 = vmatprep.subr.bf16.mxu0 0
    %285 = vmatpush1.bf16.xpose.msra.mxu0 0
    %286 = vmatprep.subr.bf16.mxu0 0
    %287 = vmatpush1.bf16.xpose.msra.mxu0 0
    %288 = vmatprep.subr.bf16.mxu0 0
    %289 = vmatpush1.bf16.xpose.msra.mxu0 0
    %290 = vmatprep.subr.bf16.mxu0 0
    %291 = vmatpush1.bf16.xpose.msra.mxu0 0
    %292 = vmatprep.subr.bf16.mxu0 0
    %293 = vmatpush1.bf16.xpose.msra.mxu0 0
    %294 = vmatprep.mubr.bf16.mxu0 0
    %295 = vmatmul.mubr.bf16.gmra.mrb[0].mxu0 %v258
    %v296 = vpop.f32.mrb[0].mxu0
    %v297 = vadd.f32 %v261, %v296
    %v298 = vpop.f32.mrb[0].mxu0
    %v299 = vpop.f32.mrb[0].mxu0
    %v300 = vpop.f32.mrb[0].mxu0
    %301 = vdwg.mxu0
    %v302 = vxor.u32 %v297, 2147483648
    %v303 = vmul.f32 %v302, 1.442695
    %v304 = vpow.pop %v303
    %v305 = vadd.f32 %v304, 1.0
    %v306 = vrcp.pop %v305
    %v307 = vmul.f32 1.0, %v306
    %vm308 = vcmask 122880
    %309 = vst.msk [vmem:[#allocation9] sm:$0x1] %vm308, %v307
    // Predicated region
    $region42: #{tpu_custom_call.1} parent=1 // pred_check
      _
    $region43: #{tpu_custom_call.1} parent=1 // pred_check_branch
      %311 = sbr.rel (0) target = $region45
    $region44: #{tpu_custom_call.1} parent=1 // pred_region
      %s313 = ssub.s32 16, 16
      %314 = vsyncadd [#allocation5], %s313
      %s316 = sshll.u32 [#allocation9], 4
      %s317 = int_to_ptr.vmem [resolvable:$true] %s316
      %319 = dma.vmem_to_hbm [thread:$0]  %s317, 16, %s7, [#allocation5]
    $region45: #{tpu_custom_call.1} parent=1 // pred_fallthru
      _
    // Predicated region
    $region46: #{tpu_custom_call.1} parent=1 // pred_check
      _
    $region47: #{tpu_custom_call.1} parent=1 // pred_check_branch
      %321 = sbr.rel (0) target = $region49
    $region48: #{tpu_custom_call.1} parent=1 // pred_region
      %322 = dma.done [#allocation5], 16
    $region49: #{tpu_custom_call.1} parent=1 // pred_fallthru
      _
    %323 = vsyncpa [#allocation4], 1
    %324 = vsyncpa [#allocation7], 1
    %325 = vsyncpa [#allocation5], 1

</llo_original>
